<compile_context>
chip_gen: v7x
topology: tpu7x:2x2x1
jax: 0.10.0
libtpu: 0.0.40
codegen_flags: <defaults>
</compile_context>

<pallas_src>
import numpy as np
import jax
import jax.numpy as jnp
from jax.experimental import pallas as pl
from jax.experimental.pallas import tpu as pltpu

# ---- small, deterministic "config" consistent with the module ----------------
H = 128                     # hidden_size
VOCAB_SIZE = 48
SEG_VOCAB_SIZE = 2
AGE_VOCAB_SIZE = 16
YEAR_VOCAB_SIZE = 16
MAX_POSITION_EMBEDDINGS = 48
LN_EPS = 1e-12


# ------------------------------------------------------------------------------
# Kernel
# ------------------------------------------------------------------------------
def make_kernel(concat_embeddings: bool, v_pad: int):
    """Kernel over one (TM, H) row tile.

    ids_ref   : (TM, 8)   int32  cols = [word, age+off, posi+off, year+off, seg, 0, 0, 0]
    table_ref : (Vpad, H) bf16   merged (and optionally catmap-folded) tables
    vecs_ref  : (8, H)    f32    rows = [catmap_b, gamma, beta, seg_row0, seg_row1, 0, 0, 0]
    out_ref   : (TM, H)   f32 or bf16
    """
    def kernel(ids_ref, table_ref, vecs_ref, out_ref):
        tm = ids_ref.shape[0]
        h_dim = out_ref.shape[1]
        ids = ids_ref[...]                                            # (TM, 8) int32

        # merged one-hot: 4 disjoint sub-vocab hits OR-ed into one (TM, Vpad) mask.
        # Compares/OR in int32/bool on the VPU; cast only the MXU operand to bf16.
        iota = jax.lax.broadcasted_iota(jnp.int32, (tm, v_pad), 1)
        onehot = ((ids[:, 0:1] == iota) |
                  (ids[:, 1:2] == iota) |
                  (ids[:, 2:3] == iota) |
                  (ids[:, 3:4] == iota)).astype(jnp.bfloat16)         # (TM, Vpad)

        # single MXU pass: word+age+posi+year gathers (folded through catmap if set)
        h = jnp.dot(onehot, table_ref[...],
                    preferred_element_type=jnp.float32)               # (TM, H) f32

        # segment embedding (vocab = 2): VPU select instead of a matmul
        seg = jnp.where(ids[:, 4:5] == 0, vecs_ref[3:4, :], vecs_ref[4:5, :])

        if concat_embeddings:
            # tanh(cat([word,age,posi,year]) @ W + b) + seg   (W already folded)
            emb = jnp.tanh(h + vecs_ref[0:1, :]) + seg
        else:
            emb = h + seg

        # BertLayerNorm over the hidden dim (eps = 1e-12), f32 math.
        # Independent s1/s2 reductions (var = E[x^2] - mean^2) shorten the
        # XLU critical path vs the serial mean->subtract->square->mean chain.
        inv_h = 1.0 / float(h_dim)
        s1 = jnp.sum(emb, axis=-1, keepdims=True)
        s2 = jnp.sum(emb * emb, axis=-1, keepdims=True)
        mean = s1 * inv_h
        var = jnp.maximum(s2 * inv_h - mean * mean, 0.0)
        normed = (emb - mean) * jax.lax.rsqrt(var + LN_EPS)
        out_ref[...] = (normed * vecs_ref[1:2, :]
                        + vecs_ref[2:3, :]).astype(out_ref.dtype)
        # dropout: identity in eval mode (no-op)
    return kernel


# ------------------------------------------------------------------------------
# Param-only precompute (hoisted out of the per-call forward path; call once)
# ------------------------------------------------------------------------------
def prepare_operands(params, concat_embeddings=True):
    """Fold catmap into the tables, merge/pad along the vocab axis (bf16 for the
    MXU), and pack the per-H vectors.  Depends only on params -> run once."""
    hidden = params["word_tab"].shape[1]
    word_tab = params["word_tab"]
    age_tab = params["age_tab"]
    posi_tab = params["posi_tab"]
    year_tab = params["year_tab"]
    vw, va, vp, vy = (word_tab.shape[0], age_tab.shape[0],
                      posi_tab.shape[0], year_tab.shape[0])

    if concat_embeddings:
        w = params["catmap_w"]                    # (4H, H), y = x @ w + b
        tabs = [word_tab @ w[0 * hidden:1 * hidden],
                age_tab @ w[1 * hidden:2 * hidden],
                posi_tab @ w[2 * hidden:3 * hidden],
                year_tab @ w[3 * hidden:4 * hidden]]
    else:
        tabs = [word_tab, age_tab, posi_tab, year_tab]
    merged = jnp.concatenate(tabs, axis=0)        # (V_total, H) f32
    v_total = merged.shape[0]
    v_pad = ((v_total + 127) // 128) * 128        # pad K to MXU width
    if v_pad > v_total:
        merged = jnp.pad(merged, ((0, v_pad - v_total), (0, 0)))
    merged = merged.astype(jnp.bfloat16)          # MXU-native; halves VMEM/DMA

    vecs = jnp.zeros((8, hidden), jnp.float32)    # VPU-side operands stay f32
    vecs = vecs.at[0].set(params["catmap_b"].reshape(hidden))
    vecs = vecs.at[1].set(params["gamma"].reshape(hidden))
    vecs = vecs.at[2].set(params["beta"].reshape(hidden))
    vecs = vecs.at[3].set(params["seg_tab"][0])
    vecs = vecs.at[4].set(params["seg_tab"][1])

    return merged, vecs, (vw, va, vp, vy)


# ------------------------------------------------------------------------------
# Forward wrapper (jit this; merged/vecs/offsets come from prepare_operands)
# ------------------------------------------------------------------------------
def bert_embeddings(word_ids, age_ids, seg_ids, posi_ids, year_ids,
                    merged, vecs, offsets,
                    concat_embeddings=True, row_tile=512,
                    out_dtype=jnp.float32):
    b, l = word_ids.shape
    n = b * l
    hidden = merged.shape[1]
    v_pad = merged.shape[0]
    vw, va, vp, vy = offsets

    def flat(x):
        return x.reshape(n).astype(jnp.int32)

    # Clip ids to gather-valid ranges so out-of-range ids cannot alias into the
    # wrong sub-table of the merged vocab (seg clipped to {0,1} for the select).
    word = jnp.clip(flat(word_ids), 0, vw - 1)
    age = jnp.clip(flat(age_ids), 0, va - 1) + vw
    posi = jnp.clip(flat(posi_ids), 0, vp - 1) + vw + va
    year = jnp.clip(flat(year_ids), 0, vy - 1) + vw + va + vp
    seg = jnp.clip(flat(seg_ids), 0, 1)
    zero = jnp.zeros((n,), jnp.int32)
    ids = jnp.stack([word, age, posi, year, seg, zero, zero, zero], axis=-1)

    # ---- row tile: large (amortizes per-step overhead + MXU fill/drain),
    #      16-aligned (safe for bf16 output tiles), and capped so the grid has
    #      >= 2 steps whenever possible (v7x megacore row-sharding).
    def rup(x, m):
        return ((x + m - 1) // m) * m

    tm = max(16, min(rup(row_tile, 16), rup(n, 16)))
    two_way_cap = max(16, rup((n + 1) // 2, 16))
    tm = min(tm, two_way_cap)
    n_pad = rup(n, tm)
    if n_pad > n:
        ids = jnp.pad(ids, ((0, n_pad - n), (0, 0)))

    out = pl.pallas_call(
        make_kernel(concat_embeddings, v_pad),
        out_shape=jax.ShapeDtypeStruct((n_pad, hidden), out_dtype),
        grid=(n_pad // tm,),
        in_specs=[
            pl.BlockSpec((tm, 8), lambda i: (i, 0)),          # ids tile (streamed)
            pl.BlockSpec((v_pad, hidden), lambda i: (0, 0)),  # merged table (resident)
            pl.BlockSpec((8, hidden), lambda i: (0, 0)),      # packed vectors (resident)
        ],
        out_specs=pl.BlockSpec((tm, hidden), lambda i: (i, 0)),
        compiler_params=pltpu.CompilerParams(
            dimension_semantics=("parallel",)),
    )(ids, merged, vecs)

    return out[:n].reshape(b, l, hidden)


# ---- deterministic parameter init ---------------------------------------------
def init_posi_embedding(max_pos, hidden):
    """Replicates BertEmbeddings._init_posi_embedding exactly."""
    pos = np.arange(max_pos, dtype=np.float32)[:, None]
    idx = np.arange(hidden)
    tab = np.zeros((max_pos, hidden), dtype=np.float32)
    even = idx[idx % 2 == 0]
    odd = idx[idx % 2 == 1]
    tab[:, even] = np.sin(pos / 10000.0 ** (2.0 * even / hidden))
    tab[:, odd] = np.cos(pos / 10000.0 ** (2.0 * odd / hidden))
    return jnp.asarray(tab)


def init_params(key):
    ks = jax.random.split(key, 6)
    scale = 0.02
    return {
        "word_tab": scale * jax.random.normal(ks[0], (VOCAB_SIZE, H), jnp.float32),
        "seg_tab":  scale * jax.random.normal(ks[1], (SEG_VOCAB_SIZE, H), jnp.float32),
        "age_tab":  scale * jax.random.normal(ks[2], (AGE_VOCAB_SIZE, H), jnp.float32),
        "year_tab": scale * jax.random.normal(ks[3], (YEAR_VOCAB_SIZE, H), jnp.float32),
        "posi_tab": init_posi_embedding(MAX_POSITION_EMBEDDINGS, H),
        # nn.Linear(4H, H): stored as (4H, H) so y = x @ W + b  (== x @ W_torch.T + b)
        "catmap_w": scale * jax.random.normal(ks[4], (4 * H, H), jnp.float32),
        "catmap_b": scale * jax.random.normal(ks[5], (1, H), jnp.float32),
        "gamma": jnp.ones((1, H), jnp.float32),
        "beta":  jnp.zeros((1, H), jnp.float32),
    }


# ---- pure-JAX f32 reference (matches the PyTorch module) ------------------------
def reference(word_ids, age_ids, seg_ids, posi_ids, year_ids, params, concat):
    word = params["word_tab"][word_ids]
    seg = params["seg_tab"][seg_ids]
    age = params["age_tab"][age_ids]
    posi = params["posi_tab"][posi_ids]
    year = params["year_tab"][year_ids]
    if concat:
        cat = jnp.concatenate([word, age, posi, year], axis=-1)
        emb = jnp.tanh(cat @ params["catmap_w"] + params["catmap_b"][0]) + seg
    else:
        emb = word + seg + age + posi + year
    mean = emb.mean(-1, keepdims=True)
    var = ((emb - mean) ** 2).mean(-1, keepdims=True)
    return (emb - mean) / jnp.sqrt(var + LN_EPS) * params["gamma"][0] + params["beta"][0]


if __name__ == "__main__":
    key = jax.random.PRNGKey(0)
    kp, kdata = jax.random.split(key)
    params = init_params(kp)

    # jit the wrapper; param-only precompute is done once, outside the call path
    fwd = jax.jit(bert_embeddings,
                  static_argnames=("offsets", "concat_embeddings",
                                   "row_tile", "out_dtype"))
    prepared = {c: prepare_operands(params, concat_embeddings=c)
                for c in (True, False)}

    ok = True
    # Cases exercise: grid=1 tiny; grid=2 exact split (megacore path); grid=2
    # with row padding and a bf16 output stream.
    cases = (
        (2, 8,  jnp.float32,  2e-2),
        (4, 48, jnp.float32,  2e-2),
        (3, 40, jnp.bfloat16, 5e-2),
    )
    for bsz, seq, out_dtype, tol in cases:
        kk = jax.random.fold_in(kdata, bsz * 1000 + seq)
        ka, kb, kc, kd = jax.random.split(kk, 4)
        word_ids = jax.random.randint(ka, (bsz, seq), 0, VOCAB_SIZE, jnp.int32)
        seg_ids = jax.random.randint(kb, (bsz, seq), 0, SEG_VOCAB_SIZE, jnp.int32)
        age_ids = jax.random.randint(kc, (bsz, seq), 0, AGE_VOCAB_SIZE, jnp.int32)
        year_ids = jax.random.randint(kd, (bsz, seq), 0, YEAR_VOCAB_SIZE, jnp.int32)
        posi_ids = jnp.broadcast_to(jnp.arange(seq, dtype=jnp.int32), (bsz, seq))

        for concat in (True, False):
            merged, vecs, offsets = prepared[concat]
            out = fwd(word_ids, age_ids, seg_ids, posi_ids, year_ids,
                      merged, vecs, offsets=offsets,
                      concat_embeddings=concat, row_tile=512,
                      out_dtype=out_dtype)
            out = jax.block_until_ready(out)
            ref = reference(word_ids, age_ids, seg_ids, posi_ids, year_ids,
                            params, concat)
            close = bool(jnp.allclose(out.astype(jnp.float32), ref,
                                      atol=tol, rtol=tol))
            ok = ok and close
            ok = ok and (out.shape == (bsz, seq, H)) and (out.dtype == out_dtype)

    if ok:
        print("KERNEL_OK")
    else:
        print("KERNEL_MISMATCH")
</pallas_src>

<mosaic_0001>
module attributes {stable_mosaic.version = 11 : i64} {
  func.func @kernel(%arg0: i32, %arg1: memref<16x8xi32, #tpu.memory_space<vmem>>, %arg2: memref<128x128xbf16, #tpu.memory_space<vmem>>, %arg3: memref<8x128xf32, #tpu.memory_space<vmem>>, %arg4: memref<16x128xf32, #tpu.memory_space<vmem>>) attributes {dimension_semantics = [#tpu.dimension_semantics<parallel>], iteration_bounds = array<i64: 1>, scalar_prefetch = 0 : i64, scratch_operands = 0 : i64, tpu.core_type = #tpu.core_type<tc>, window_params = [{transform_indices = @transform_0, window_bounds = array<i64: 16, 8>}, {pipeline_mode = #tpu.pipeline_mode<synchronous>, transform_indices = @transform_1, window_bounds = array<i64: 128, 128>}, {pipeline_mode = #tpu.pipeline_mode<synchronous>, transform_indices = @transform_2, window_bounds = array<i64: 8, 128>}, {transform_indices = @transform_3, window_bounds = array<i64: 16, 128>}]} {
    %c0 = arith.constant 0 : index
    %c0_0 = arith.constant 0 : index
    %0 = vector.load %arg1[%c0, %c0_0] : memref<16x8xi32, #tpu.memory_space<vmem>>, vector<16x8xi32>
    %1 = tpu.iota {dimensions = array<i32: 1>} : vector<16x128xi32>
    %2 = vector.extract_strided_slice %0 {offsets = [0, 0], sizes = [16, 1], strides = [1, 1]} : vector<16x8xi32> to vector<16x1xi32>
    %3 = vector.broadcast %2 : vector<16x1xi32> to vector<16x128xi32>
    %4 = arith.cmpi eq, %3, %1 : vector<16x128xi32>
    %5 = vector.extract_strided_slice %0 {offsets = [0, 1], sizes = [16, 1], strides = [1, 1]} : vector<16x8xi32> to vector<16x1xi32>
    %6 = vector.broadcast %5 : vector<16x1xi32> to vector<16x128xi32>
    %7 = arith.cmpi eq, %6, %1 : vector<16x128xi32>
    %8 = arith.ori %4, %7 : vector<16x128xi1>
    %9 = vector.extract_strided_slice %0 {offsets = [0, 2], sizes = [16, 1], strides = [1, 1]} : vector<16x8xi32> to vector<16x1xi32>
    %10 = vector.broadcast %9 : vector<16x1xi32> to vector<16x128xi32>
    %11 = arith.cmpi eq, %10, %1 : vector<16x128xi32>
    %12 = arith.ori %8, %11 : vector<16x128xi1>
    %13 = vector.extract_strided_slice %0 {offsets = [0, 3], sizes = [16, 1], strides = [1, 1]} : vector<16x8xi32> to vector<16x1xi32>
    %14 = vector.broadcast %13 : vector<16x1xi32> to vector<16x128xi32>
    %15 = arith.cmpi eq, %14, %1 : vector<16x128xi32>
    %16 = arith.ori %12, %15 : vector<16x128xi1>
    %17 = arith.extui %16 : vector<16x128xi1> to vector<16x128xi32>
    %18 = arith.sitofp %17 : vector<16x128xi32> to vector<16x128xf32>
    %19 = arith.truncf %18 : vector<16x128xf32> to vector<16x128xbf16>
    %c0_1 = arith.constant 0 : index
    %c0_2 = arith.constant 0 : index
    %20 = vector.load %arg2[%c0_1, %c0_2] : memref<128x128xbf16, #tpu.memory_space<vmem>>, vector<128x128xbf16>
    %cst = arith.constant dense<0.000000e+00> : vector<16x128xf32>
    %21 = tpu.matmul %19, %20, %cst {dimension_numbers = #tpu.dot_dimension_numbers<[1], [0], [0], [1], [0, 0, 1, 1], [], []>} : vector<16x128xbf16>, vector<128x128xbf16>, vector<16x128xf32> -> vector<16x128xf32>
    %22 = vector.extract_strided_slice %0 {offsets = [0, 4], sizes = [16, 1], strides = [1, 1]} : vector<16x8xi32> to vector<16x1xi32>
    %c0_i32 = arith.constant 0 : i32
    %23 = vector.broadcast %c0_i32 : i32 to vector<16x1xi32>
    %24 = arith.cmpi eq, %22, %23 : vector<16x1xi32>
    %c3 = arith.constant 3 : index
    %c0_3 = arith.constant 0 : index
    %25 = vector.load %arg3[%c3, %c0_3] : memref<8x128xf32, #tpu.memory_space<vmem>>, vector<1x128xf32>
    %c4 = arith.constant 4 : index
    %c0_4 = arith.constant 0 : index
    %26 = vector.load %arg3[%c4, %c0_4] : memref<8x128xf32, #tpu.memory_space<vmem>>, vector<1x128xf32>
    %27 = vector.shape_cast %24 : vector<16x1xi1> to vector<16x1xi1>
    %28 = vector.broadcast %27 : vector<16x1xi1> to vector<16x128xi1>
    %29 = vector.shape_cast %25 : vector<1x128xf32> to vector<1x128xf32>
    %30 = vector.broadcast %29 : vector<1x128xf32> to vector<16x128xf32>
    %31 = vector.shape_cast %26 : vector<1x128xf32> to vector<1x128xf32>
    %32 = vector.broadcast %31 : vector<1x128xf32> to vector<16x128xf32>
    %33 = arith.select %28, %30, %32 : vector<16x128xi1>, vector<16x128xf32>
    %c0_5 = arith.constant 0 : index
    %c0_6 = arith.constant 0 : index
    %34 = vector.load %arg3[%c0_5, %c0_6] : memref<8x128xf32, #tpu.memory_space<vmem>>, vector<1x128xf32>
    %35 = vector.broadcast %34 : vector<1x128xf32> to vector<16x128xf32>
    %36 = arith.addf %21, %35 : vector<16x128xf32>
    %37 = math.tanh %36 : vector<16x128xf32>
    %38 = arith.addf %37, %33 : vector<16x128xf32>
    %cst_7 = arith.constant dense<0.000000e+00> : vector<16xf32>
    %39 = vector.multi_reduction <add>, %38, %cst_7 [1] : vector<16x128xf32> to vector<16xf32>
    %40 = vector.shape_cast %39 : vector<16xf32> to vector<16x1xf32>
    %41 = arith.mulf %38, %38 : vector<16x128xf32>
    %cst_8 = arith.constant dense<0.000000e+00> : vector<16xf32>
    %42 = vector.multi_reduction <add>, %41, %cst_8 [1] : vector<16x128xf32> to vector<16xf32>
    %43 = vector.shape_cast %42 : vector<16xf32> to vector<16x1xf32>
    %cst_9 = arith.constant 7.812500e-03 : f32
    %44 = vector.broadcast %cst_9 : f32 to vector<16x1xf32>
    %45 = arith.mulf %40, %44 : vector<16x1xf32>
    %cst_10 = arith.constant 7.812500e-03 : f32
    %46 = vector.broadcast %cst_10 : f32 to vector<16x1xf32>
    %47 = arith.mulf %43, %46 : vector<16x1xf32>
    %48 = arith.mulf %45, %45 : vector<16x1xf32>
    %49 = arith.subf %47, %48 : vector<16x1xf32>
    %cst_11 = arith.constant 0.000000e+00 : f32
    %50 = vector.broadcast %cst_11 : f32 to vector<16x1xf32>
    %51 = arith.maximumf %49, %50 : vector<16x1xf32>
    %52 = vector.broadcast %45 : vector<16x1xf32> to vector<16x128xf32>
    %53 = arith.subf %38, %52 : vector<16x128xf32>
    %cst_12 = arith.constant 9.99999996E-13 : f32
    %54 = vector.broadcast %cst_12 : f32 to vector<16x1xf32>
    %55 = arith.addf %51, %54 : vector<16x1xf32>
    %56 = math.rsqrt %55 : vector<16x1xf32>
    %57 = vector.broadcast %56 : vector<16x1xf32> to vector<16x128xf32>
    %58 = arith.mulf %53, %57 : vector<16x128xf32>
    %c1 = arith.constant 1 : index
    %c0_13 = arith.constant 0 : index
    %59 = vector.load %arg3[%c1, %c0_13] : memref<8x128xf32, #tpu.memory_space<vmem>>, vector<1x128xf32>
    %60 = vector.broadcast %59 : vector<1x128xf32> to vector<16x128xf32>
    %61 = arith.mulf %58, %60 : vector<16x128xf32>
    %c2 = arith.constant 2 : index
    %c0_14 = arith.constant 0 : index
    %62 = vector.load %arg3[%c2, %c0_14] : memref<8x128xf32, #tpu.memory_space<vmem>>, vector<1x128xf32>
    %63 = vector.broadcast %62 : vector<1x128xf32> to vector<16x128xf32>
    %64 = arith.addf %61, %63 : vector<16x128xf32>
    %c0_15 = arith.constant 0 : index
    %c0_16 = arith.constant 0 : index
    %65 = vector.load %arg4[%c0_15, %c0_16] : memref<16x128xf32, #tpu.memory_space<vmem>>, vector<16x128xf32>
    tpu.vector_store %arg4[%c0_15, %c0_16], %64 {strides = array<i32>} : memref<16x128xf32, #tpu.memory_space<vmem>>, vector<16x128xf32>,
    return
  }
  func.func @transform_0(%arg0: i32) -> (i32, i32) {
    %c0_i32 = arith.constant 0 : i32
    %c0_i32_0 = arith.constant 0 : i32
    return %arg0, %c0_i32 : i32, i32
  }
  func.func @transform_1(%arg0: i32) -> (i32, i32) {
    %c0_i32 = arith.constant 0 : i32
    %c0_i32_0 = arith.constant 0 : i32
    %c0_i32_1 = arith.constant 0 : i32
    return %c0_i32, %c0_i32_0 : i32, i32
  }
  func.func @transform_2(%arg0: i32) -> (i32, i32) {
    %c0_i32 = arith.constant 0 : i32
    %c0_i32_0 = arith.constant 0 : i32
    %c0_i32_1 = arith.constant 0 : i32
    return %c0_i32, %c0_i32_0 : i32, i32
  }
  func.func @transform_3(%arg0: i32) -> (i32, i32) {
    %c0_i32 = arith.constant 0 : i32
    %c0_i32_0 = arith.constant 0 : i32
    return %arg0, %c0_i32 : i32, i32
  }
}

</mosaic_0001>

<llo_original>
// kernel: bert_embeddings.1
$region0: #{bert_embeddings.1}
  #allocation0 [shape = 'u32[]', space=smem, size = 0x4, offset = 0x4, fixed_abs, tag = 'smem constant byte address 0x4 - core index']
  #allocation1 [shape = 'u32[144,128]{1,0:T(1,128)}', space=vmem, size = 0x12000, scoped, tag = 'internal scratch']
  %s0 = inlined_call_operand.vmem [shape: s32[16,8], index: 0, kind: input, shape index: {}]
  %s1 = inlined_call_operand.vmem [shape: bf16[128,128], index: 1, kind: input, shape index: {}]
  %s2 = inlined_call_operand.vmem [shape: f32[8,128], index: 2, kind: input, shape index: {}]
  %s3 = inlined_call_operand.hbm [shape: f32[16,128], index: 3, kind: output, shape index: {}]
  %s4 = sld [smem:[#allocation0]]
  $region22: #{bert_embeddings.1} parent=0
    _
  %s6 = ssub.s32 1, %s4
  %s7 = scalar_select 0, %s6, %s4
  $region1: #{bert_embeddings.1} parent=0
    #allocation2 [shape = 'u8[8192]{0}', space=vmem, size = 0x2000, scoped, tag = 'output window, operand 0, single buffered']
    #allocation3 [shape = 's32[1]{0}', space=sflag, size = 0x4, scoped, tag = 'scoped memory for bert_embeddings.1']
    %8 = vsyncpa [#allocation3], 0
    // Predicated region
    $region2: #{bert_embeddings.1} parent=1 // pred_check
      _
    $region3: #{bert_embeddings.1} parent=1 // pred_check_branch
      %10 = sbr.rel (0) target = $region5
    $region4: #{bert_embeddings.1} parent=1 // pred_region
      _
    $region5: #{bert_embeddings.1} parent=1 // pred_fallthru
      _
    // Predicated region
    $region6: #{bert_embeddings.1} parent=1 // pred_check
      _
    $region7: #{bert_embeddings.1} parent=1 // pred_check_branch
      %12 = sbr.rel (0) target = $region9
    $region8: #{bert_embeddings.1} parent=1 // pred_region
      _
    $region9: #{bert_embeddings.1} parent=1 // pred_fallthru
      _
    // Predicated region
    $region10: #{bert_embeddings.1} parent=1 // pred_check
      _
    $region11: #{bert_embeddings.1} parent=1 // pred_check_branch
      %14 = sbr.rel (0) target = $region13
    $region12: #{bert_embeddings.1} parent=1 // pred_region
      _
    $region13: #{bert_embeddings.1} parent=1 // pred_fallthru
      _
    %v16 = vld [vmem:[%s0] sm:$0xff]
    %v17 = vld [vmem:[%s0 + $0x8] sm:$0xff]
    %v18 = vlaneseq
    %v19 = vand.u32 %v18, 127
    %20 = vset.pattern.permute.xlu0 0
    %21 = vperm.xlu0 %20, %v16
    %v22 = vpop.permute.xlu0 %21
    %23 = vset.pattern.permute.xlu0 0
    %24 = vperm.xlu0 %23, %v17
    %v25 = vpop.permute.xlu0 %24
    %vm26 = vcmp.eq.s32.totalorder %v22, %v19
    %vm27 = vcmp.eq.s32.totalorder %v25, %v19
    %28 = vset.pattern.permute.xlu0 1
    %29 = vperm.xlu0 %28, %v16
    %v30 = vpop.permute.xlu0 %29
    %31 = vset.pattern.permute.xlu0 1
    %32 = vperm.xlu0 %31, %v17
    %v33 = vpop.permute.xlu0 %32
    %vm34 = vcmp.eq.s32.totalorder %v30, %v19
    %vm35 = vcmp.eq.s32.totalorder %v33, %v19
    %vm36 = vmor %vm26, %vm34
    %vm37 = vmor %vm27, %vm35
    %38 = vset.pattern.permute.xlu0 2
    %39 = vperm.xlu0 %38, %v16
    %v40 = vpop.permute.xlu0 %39
    %41 = vset.pattern.permute.xlu0 2
    %42 = vperm.xlu0 %41, %v17
    %v43 = vpop.permute.xlu0 %42
    %vm44 = vcmp.eq.s32.totalorder %v40, %v19
    %vm45 = vcmp.eq.s32.totalorder %v43, %v19
    %vm46 = vmor %vm36, %vm44
    %vm47 = vmor %vm37, %vm45
    %48 = vset.pattern.permute.xlu0 3
    %49 = vperm.xlu0 %48, %v16
    %v50 = vpop.permute.xlu0 %49
    %51 = vset.pattern.permute.xlu0 3
    %52 = vperm.xlu0 %51, %v17
    %v53 = vpop.permute.xlu0 %52
    %vm54 = vcmp.eq.s32.totalorder %v50, %v19
    %vm55 = vcmp.eq.s32.totalorder %v53, %v19
    %vm56 = vmor %vm46, %vm54
    %vm57 = vmor %vm47, %vm55
    %v58 = vsel %vm56, 1, 0
    %v59 = vsel %vm57, 1, 0
    %v60 = vcvt.s32.f32 %v58
    %v61 = vcvt.s32.f32 %v59
    %v62 = vpack.c.bf16 %v61, %v60
    %v63 = vld [vmem:[%s1] sm:$0xf]
    %v64 = vld [vmem:[%s1 + $0x4] sm:$0xf]
    %v65 = vld [vmem:[%s1 + $0x8] sm:$0xf]
    %v66 = vld [vmem:[%s1 + $0xc] sm:$0xf]
    %v67 = vld [vmem:[%s1 + $0x10] sm:$0xf]
    %v68 = vld [vmem:[%s1 + $0x14] sm:$0xf]
    %v69 = vld [vmem:[%s1 + $0x18] sm:$0xf]
    %v70 = vld [vmem:[%s1 + $0x1c] sm:$0xf]
    %v71 = vld [vmem:[%s1 + $0x20] sm:$0xf]
    %v72 = vld [vmem:[%s1 + $0x24] sm:$0xf]
    %v73 = vld [vmem:[%s1 + $0x28] sm:$0xf]
    %v74 = vld [vmem:[%s1 + $0x2c] sm:$0xf]
    %v75 = vld [vmem:[%s1 + $0x30] sm:$0xf]
    %v76 = vld [vmem:[%s1 + $0x34] sm:$0xf]
    %v77 = vld [vmem:[%s1 + $0x38] sm:$0xf]
    %v78 = vld [vmem:[%s1 + $0x3c] sm:$0xf]
    %vm79 = vcmp.eq.s32.totalorder %v16, 0
    %vm80 = vcmp.eq.s32.totalorder %v17, 0
    %v81 = vld [vmem:[%s2 + $0x3] sm:$0x1]
    %v82 = vld [vmem:[%s2 + $0x4] sm:$0x1]
    %v83 = vsel %vm79, 1, 0
    %v84 = vsel %vm80, 1, 0
    %85 = vset.pattern.permute.xlu0 4
    %86 = vperm.xlu0 %85, %v83
    %v87 = vpop.permute.xlu0 %86
    %88 = vset.pattern.permute.xlu0 4
    %89 = vperm.xlu0 %88, %v84
    %v90 = vpop.permute.xlu0 %89
    %vm91 = vcmp.eq.s32.totalorder %v87, 1
    %vm92 = vcmp.eq.s32.totalorder %v90, 1
    %v93 = vlaneseq
    %v94 = vshrl.u32 %v93, 7
    %v95 = vsub.s32 0, %v94
    %v96 = vrot.slane %v81, %v95
    %v97 = vlaneseq
    %v98 = vshrl.u32 %v97, 7
    %v99 = vsub.s32 0, %v98
    %v100 = vrot.slane %v82, %v99
    %v101 = vsel %vm91, %v96, %v100
    %v102 = vsel %vm92, %v96, %v100
    %v103 = vld [vmem:[%s2] sm:$0x1]
    %v104 = vlaneseq
    %v105 = vshrl.u32 %v104, 7
    %v106 = vsub.s32 0, %v105
    %v107 = vrot.slane %v103, %v106
    %v124 = vunpack.c.l.b16 %v63
    %v125 = vunpack.c.l.b16 %v64
    %v126 = vunpack.c.l.b16 %v65
    %v127 = vunpack.c.l.b16 %v66
    %v128 = vunpack.c.l.b16 %v67
    %v129 = vunpack.c.l.b16 %v68
    %v130 = vunpack.c.l.b16 %v69
    %v131 = vunpack.c.l.b16 %v70
    %v132 = vunpack.c.l.b16 %v71
    %v133 = vunpack.c.l.b16 %v72
    %v134 = vunpack.c.l.b16 %v73
    %v135 = vunpack.c.l.b16 %v74
    %v136 = vunpack.c.l.b16 %v75
    %v137 = vunpack.c.l.b16 %v76
    %v138 = vunpack.c.l.b16 %v77
    %v139 = vunpack.c.l.b16 %v78
    %v140 = vpack.c.b16 %v125, %v124
    %v141 = vpack.c.b16 %v127, %v126
    %v142 = vpack.c.b16 %v129, %v128
    %v143 = vpack.c.b16 %v131, %v130
    %v144 = vpack.c.b16 %v133, %v132
    %v145 = vpack.c.b16 %v135, %v134
    %v146 = vpack.c.b16 %v137, %v136
    %v147 = vpack.c.b16 %v139, %v138
    %156 = vmatprep.subr.bf16.mxu0 0
    %157 = vmatpush1.bf16.msra.mxu0 %v140
    %158 = vmatprep.subr.bf16.mxu0 0
    %159 = vmatpush1.bf16.msra.mxu0 %v141
    %160 = vmatprep.subr.bf16.mxu0 0
    %161 = vmatpush1.bf16.msra.mxu0 %v142
    %162 = vmatprep.subr.bf16.mxu0 0
    %163 = vmatpush1.bf16.msra.mxu0 %v143
    %164 = vmatprep.subr.bf16.mxu0 0
    %165 = vmatpush1.bf16.msra.mxu0 %v144
    %166 = vmatprep.subr.bf16.mxu0 0
    %167 = vmatpush1.bf16.msra.mxu0 %v145
    %168 = vmatprep.subr.bf16.mxu0 0
    %169 = vmatpush1.bf16.msra.mxu0 %v146
    %170 = vmatprep.subr.bf16.mxu0 0
    %171 = vmatpush1.bf16.msra.mxu0 %v147
    %172 = vmatprep.subr.bf16.mxu0 0
    %173 = vmatpush1.bf16.msra.mxu0 0
    %174 = vmatprep.subr.bf16.mxu0 0
    %175 = vmatpush1.bf16.msra.mxu0 0
    %176 = vmatprep.subr.bf16.mxu0 0
    %177 = vmatpush1.bf16.msra.mxu0 0
    %178 = vmatprep.subr.bf16.mxu0 0
    %179 = vmatpush1.bf16.msra.mxu0 0
    %180 = vmatprep.subr.bf16.mxu0 0
    %181 = vmatpush1.bf16.msra.mxu0 0
    %182 = vmatprep.subr.bf16.mxu0 0
    %183 = vmatpush1.bf16.msra.mxu0 0
    %184 = vmatprep.subr.bf16.mxu0 0
    %185 = vmatpush1.bf16.msra.mxu0 0
    %186 = vmatprep.subr.bf16.mxu0 0
    %187 = vmatpush1.bf16.msra.mxu0 0
    %188 = vmatprep.mubr.bf16.mxu0 0
    %189 = vmatmul.mubr.bf16.gmra.mrb[0].mxu0 %v62
    %v190 = vpop.f32.mrb[0].mxu0
    %v191 = vadd.f32 %v107, %v190
    %v192 = vpop.f32.mrb[0].mxu0
    %v193 = vpop.f32.mrb[0].mxu0
    %v194 = vadd.f32 %v107, %v193
    %v195 = vpop.f32.mrb[0].mxu0
    %196 = vdwg.mxu0
    %v197 = vtanh.pop %v191
    %v198 = vtanh.pop %v194
    %v199 = vadd.f32 %v197, %v101
    %v200 = vadd.f32 %v198, %v102
    %201 = vadd.xlane.f32.xlu0 %v199
    %v202 = vpop.xlane.xlu0 %201
    %203 = vadd.xlane.f32.xlu0 %v200
    %v204 = vpop.xlane.xlu0 %203
    %v205 = vmul.f32 %v199, %v199
    %v206 = vmul.f32 %v200, %v200
    %207 = vadd.xlane.f32.xlu0 %v205
    %v208 = vpop.xlane.xlu0 %207
    %209 = vadd.xlane.f32.xlu0 %v206
    %v210 = vpop.xlane.xlu0 %209
    %v211 = vmul.f32 %v202, 0.0078125
    %v212 = vmul.f32 %v204, 0.0078125
    %v213 = vmul.f32 %v208, 0.0078125
    %v214 = vmul.f32 %v210, 0.0078125
    %v215 = vmul.f32 %v211, %v211
    %v216 = vmul.f32 %v212, %v212
    %v217 = vsub.f32 %v213, %v215
    %v218 = vsub.f32 %v214, %v216
    %v219 = vmax.f32 %v217, 0.0
    %v220 = vmax.f32 %v218, 0.0
    %v221 = vsub.f32 %v199, %v211
    %v222 = vsub.f32 %v200, %v212
    %v223 = vadd.f32 %v219, 1e-12
    %v224 = vadd.f32 %v220, 1e-12
    %v225 = vrsqrt.pop %v223
    %v226 = vrsqrt.pop %v224
    %v227 = vmul.f32 %v221, %v225
    %v228 = vmul.f32 %v222, %v226
    %v229 = vld [vmem:[%s2 + $0x1] sm:$0x1]
    %v230 = vlaneseq
    %v231 = vshrl.u32 %v230, 7
    %v232 = vsub.s32 0, %v231
    %v233 = vrot.slane %v229, %v232
    %v234 = vmul.f32 %v227, %v233
    %v235 = vmul.f32 %v228, %v233
    %v236 = vld [vmem:[%s2 + $0x2] sm:$0x1]
    %v237 = vlaneseq
    %v238 = vshrl.u32 %v237, 7
    %v239 = vsub.s32 0, %v238
    %v240 = vrot.slane %v236, %v239
    %v241 = vadd.f32 %v234, %v240
    %v242 = vadd.f32 %v235, %v240
    %243 = vst [vmem:[#allocation2] sm:$0xff] %v241
    %244 = vst [vmem:[#allocation2 + $0x8] sm:$0xff] %v242
    // Predicated region
    $region14: #{bert_embeddings.1} parent=1 // pred_check
      _
    $region15: #{bert_embeddings.1} parent=1 // pred_check_branch
      %246 = sbr.rel (0) target = $region17
    $region16: #{bert_embeddings.1} parent=1 // pred_region
      %s248 = ssub.s32 256, 256
      %249 = vsyncadd [#allocation3], %s248
      %s250 = sshll.u32 [#allocation2], 4
      %s251 = int_to_ptr.vmem [resolvable:$true] %s250
      %256 = dma.vmem_to_hbm [thread:$0]  %s251, 256, %s3, [#allocation3], 128, 128, 8
    $region17: #{bert_embeddings.1} parent=1 // pred_fallthru
      _
    // Predicated region
    $region18: #{bert_embeddings.1} parent=1 // pred_check
      _
    $region19: #{bert_embeddings.1} parent=1 // pred_check_branch
      %258 = sbr.rel (0) target = $region21
    $region20: #{bert_embeddings.1} parent=1 // pred_region
      %259 = dma.done [#allocation3], 256
    $region21: #{bert_embeddings.1} parent=1 // pred_fallthru
      _
    %260 = vsyncpa [#allocation3], 1

</llo_original>
